<compile_context>
chip_gen: v7x
topology: tpu7x:2x2x1
jax: 0.10.0
libtpu: 0.0.40
codegen_flags: <defaults>
</compile_context>

<pallas_src>
from collections import namedtuple
from functools import partial

import jax
import jax.numpy as jnp
from jax import lax
from jax.experimental import pallas as pl
from jax.experimental.pallas import tpu as pltpu

CELossOutput = namedtuple("CELossOutput", ["out"])
ModelOutput = namedtuple("ModelOutput", ["out"])

# Large-negative (finite) sentinel: exp(NEG_BIG - anything_real) underflows to
# exactly 0, and it never wins a max against real logits.  Finite (not -inf)
# so padded-only rows/lanes stay NaN-free.
NEG_BIG = -1e30


def _round_up(x: int, m: int) -> int:
    return ((x + m - 1) // m) * m


def _cdiv(a: int, b: int) -> int:
    return (a + b - 1) // b


def _ce_rowloss_kernel(logits_ref, target_ref, out_ref, m_ref, l_ref, t_ref,
                       *, c_tile: int):
    """Online logsumexp over class tiles with lane-wise running stats.

    Scratch (persist across the class-tile grid axis, reset at j == 0):
      m_ref: (RB, 128) running lane-wise max
      l_ref: (RB, 128) running lane-wise sum(exp(x - m))
      t_ref: (RB, 128) lane-wise accumulation of the one-hot target logit
    """
    j = pl.program_id(1)                     # class-tile index (reduction axis)
    nk = c_tile // 128                       # 128-lane chunks per class tile
    rb = m_ref.shape[0]

    @pl.when(j == 0)
    def _():
        m_ref[...] = jnp.full_like(m_ref, NEG_BIG)
        l_ref[...] = jnp.zeros_like(l_ref)
        t_ref[...] = jnp.zeros_like(t_ref)

    # ---- Pass 1: lane-wise max of this tile (VPU vmax in the native dtype,
    # widened once; no cross-lane work, no tile-sized f32 temporary).
    m_tile = logits_ref[:, 0:128]
    for k in range(1, nk):
        m_tile = jnp.maximum(m_tile, logits_ref[:, k * 128:(k + 1) * 128])
    m_prev = m_ref[...]
    m_new = jnp.maximum(m_prev, m_tile.astype(jnp.float32))
    m_ref[...] = m_new
    # Rescale the running sum-of-exp once per tile (== 0 on the first tile).
    l_ref[...] = l_ref[...] * jnp.exp(m_prev - m_new)

    # ---- Pass 2: accumulate exp and the one-hot target logit chunk by chunk.
    # Target class index relative to this tile's first class.
    # TODO(synk): ignore_index / out-of-range target checks (PyTorch behavior)
    # are not reproduced; bad indices silently contribute a 0 target logit.
    lane = lax.broadcasted_iota(jnp.int32, (rb, 128), 1)          # tiny, per-chunk reuse
    rel = target_ref[...] - j * c_tile                            # (RB, 1) int32
    for k in range(nk):
        chunk = logits_ref[:, k * 128:(k + 1) * 128].astype(jnp.float32)
        l_ref[...] += jnp.exp(chunk - m_new)
        t_ref[...] += jnp.where(lane == (rel - k * 128), chunk, 0.0)

    # ---- Epilogue: the only cross-lane (XLU) reductions, once per row block.
    @pl.when(j == pl.num_programs(1) - 1)
    def _():
        m_lane = m_ref[...]
        m_row = jnp.max(m_lane, axis=-1, keepdims=True)                       # (RB, 1)
        l_row = jnp.sum(l_ref[...] * jnp.exp(m_lane - m_row), axis=-1, keepdims=True)
        t_row = jnp.sum(t_ref[...], axis=-1, keepdims=True)
        out_ref[...] = m_row + jnp.log(l_row) - t_row


def _choose_tiles(n, c, itemsize, *, max_tile_bytes, target_rows=64,
                  max_rows=1024, max_chunks=64):
    """Pick (row_block, c_tile): ~max_tile_bytes per pipeline buffer, lane-friendly."""
    n16 = _round_up(max(n, 1), 16)          # bf16 sublane packing = 16 rows/vreg
    c_pad128 = _round_up(max(c, 1), 128)
    # Modest row block (bounds the (RB,128) accumulators / register pressure),
    # largest class tile that fits the budget -> long contiguous DMA rows.
    rb = max(16, min(target_rows, n16))
    ct = (max_tile_bytes // (rb * itemsize)) // 128 * 128
    ct = max(128, min(ct, c_pad128, 128 * max_chunks))
    if ct >= c_pad128:
        # Whole (padded) class axis fits in one tile: grow the row block so each
        # grid step still moves ~max_tile_bytes (amortizes ~0.35us/step overhead).
        rows = (max_tile_bytes // (ct * itemsize)) // 16 * 16
        rb = max(16, min(max_rows, rows, n16))
    # Keep >= 2 row blocks whenever N allows so the "parallel" row axis can be
    # split across v7x's two TensorCores (free on 1-TC v5e/v6e).
    while rb > 16 and n > 16 and _cdiv(n, rb) < 2:
        rb = max(16, ((rb // 2) // 16) * 16)
    return rb, ct


def _default_vmem_limit_bytes():
    """Generation-aware VMEM limit: half of physical, capped at 48 MiB."""
    cap = None
    try:
        cap = getattr(pltpu.get_tpu_info(), "vmem_capacity_bytes", None)
    except Exception:
        cap = None
    if not cap:
        return 32 * 1024 * 1024
    return int(min(max(cap // 2, 16 * 1024 * 1024), 48 * 1024 * 1024))


def _ce_row_losses(logits, target2d, *, row_block, c_tile, vmem_limit_bytes):
    n, c = logits.shape
    grid = (n // row_block, c // c_tile)
    return pl.pallas_call(
        partial(_ce_rowloss_kernel, c_tile=c_tile),
        out_shape=jax.ShapeDtypeStruct((n, 1), jnp.float32),
        grid_spec=pltpu.PrefetchScalarGridSpec(
            num_scalar_prefetch=0,
            grid=grid,
            in_specs=[
                pl.BlockSpec((row_block, c_tile), lambda i, j: (i, j)),  # logits
                pl.BlockSpec((row_block, 1), lambda i, j: (i, 0)),       # targets
            ],
            out_specs=pl.BlockSpec((row_block, 1), lambda i, j: (i, 0)),  # per-row loss
            scratch_shapes=[
                pltpu.VMEM((row_block, 128), jnp.float32),   # lane-wise running max
                pltpu.VMEM((row_block, 128), jnp.float32),   # lane-wise sum(exp)
                pltpu.VMEM((row_block, 128), jnp.float32),   # lane-wise target logit
            ],
        ),
        compiler_params=pltpu.CompilerParams(
            # Row blocks are independent -> "parallel" (v7x megacore sharding);
            # class-tile axis is the sequential online-LSE reduction (last).
            dimension_semantics=("parallel", "arbitrary"),
            vmem_limit_bytes=vmem_limit_bytes,
        ),
    )(logits, target2d)


def ce_loss_mean(logits, target, *, row_block=None, c_tile=None,
                 vmem_limit_bytes=None):
    """Mean cross-entropy. logits: (N, C[, d1..dk]) float, target: (N[, d1..dk]) int."""
    if logits.ndim > 2:
        # PyTorch CE with spatial dims: (N, C, d1..dk) + target (N, d1..dk).
        perm = (0,) + tuple(range(2, logits.ndim)) + (1,)
        logits = jnp.transpose(logits, perm).reshape(-1, logits.shape[1])
        target = target.reshape(-1)
    n, c = logits.shape
    itemsize = jnp.dtype(logits.dtype).itemsize

    # Tile budget per pipeline buffer: intermediates in the kernel are only
    # chunk-sized (RB,128), so VMEM use ~= 2 * tile + 3 * RB*128*4 bytes.
    max_tile_bytes = (4 << 20) if itemsize >= 4 else (2 << 20)
    rb_auto, ct_auto = _choose_tiles(n, c, itemsize, max_tile_bytes=max_tile_bytes)
    rb = int(row_block) if row_block is not None else rb_auto
    ct = int(c_tile) if c_tile is not None else ct_auto
    assert rb % 8 == 0 and ct % 128 == 0, (rb, ct)

    # Pad to full tiles: padded classes get NEG_BIG (exp underflows to 0, never
    # wins the max); padded rows are masked out of the final mean.
    n_pad = _round_up(n, rb)
    c_pad = _round_up(c, ct)
    if (n_pad, c_pad) != (n, c):
        logits = jnp.pad(logits, ((0, n_pad - n), (0, c_pad - c)),
                         constant_values=NEG_BIG)
    tgt = target.astype(jnp.int32)
    if n_pad != n:
        tgt = jnp.pad(tgt, (0, n_pad - n))          # padded targets -> class 0 (masked)
    tgt = tgt.reshape(n_pad, 1)

    limit = (vmem_limit_bytes if vmem_limit_bytes is not None
             else _default_vmem_limit_bytes())
    row_losses = _ce_row_losses(logits, tgt, row_block=rb, c_tile=ct,
                                vmem_limit_bytes=limit)
    # Tiny final reduction stays in JAX so the kernel's row axis can be split
    # across cores; padded rows are dropped here.
    return jnp.mean(row_losses[:n, 0])


def ce_loss_module(outputs, target):
    """Mirror of CELoss.forward (reduction='mean'): outputs.out are the logits."""
    # TODO(synk): class weights, ignore_index, label_smoothing and other
    # reductions of nn.CrossEntropyLoss are not implemented.
    return CELossOutput(ce_loss_mean(outputs.out, target))


def _reference_ce_mean(logits, target):
    logits = logits.astype(jnp.float32)
    lse = jax.scipy.special.logsumexp(logits, axis=-1)
    tgt = jnp.take_along_axis(logits, target[:, None].astype(jnp.int32), axis=-1)[:, 0]
    return jnp.mean(lse - tgt)


if __name__ == "__main__":
    key = jax.random.PRNGKey(0)
    k1, k2, k3, k4, k5, k6 = jax.random.split(key, 6)

    # Case 1: tiny shapes matching the module's toy usage (C padded 8 -> 128).
    N, C = 16, 8
    logits = jax.random.normal(k1, (N, C), dtype=jnp.float32)
    target = jax.random.randint(k2, (N,), 0, C, dtype=jnp.int32)
    out = ce_loss_module(ModelOutput(out=logits), target)
    loss = jax.block_until_ready(out.out)
    ref = _reference_ce_mean(logits, target)
    assert jnp.allclose(loss, ref, atol=1e-5, rtol=1e-5), (loss, ref)

    # Case 2: bf16 logits, forced multi-tile grid (2 row blocks x 2 class tiles)
    # to exercise the online logsumexp across class tiles.
    N2, C2 = 64, 256
    logits2 = jax.random.normal(k3, (N2, C2), dtype=jnp.float32).astype(jnp.bfloat16)
    target2 = jax.random.randint(k4, (N2,), 0, C2, dtype=jnp.int32)
    loss2 = jax.block_until_ready(
        ce_loss_mean(logits2, target2, row_block=32, c_tile=128))
    ref2 = _reference_ce_mean(logits2, target2)
    assert jnp.allclose(loss2, ref2, atol=1e-4, rtol=1e-4), (loss2, ref2)

    # Case 3: awkward shapes -> both N and C padded, auto tiling, multi-chunk tile.
    N3, C3 = 50, 300
    logits3 = jax.random.normal(k5, (N3, C3), dtype=jnp.float32)
    target3 = jax.random.randint(k6, (N3,), 0, C3, dtype=jnp.int32)
    loss3 = jax.block_until_ready(ce_loss_mean(logits3, target3))
    ref3 = _reference_ce_mean(logits3, target3)
    assert jnp.allclose(loss3, ref3, atol=1e-5, rtol=1e-5), (loss3, ref3)

    print("KERNEL_OK")
</pallas_src>

<mosaic_0001>
module attributes {stable_mosaic.version = 11 : i64} {
  func.func @_ce_rowloss_kernel(%arg0: i32, %arg1: i32, %arg2: memref<16x128xf32, #tpu.memory_space<vmem>>, %arg3: memref<16x1xi32, #tpu.memory_space<vmem>>, %arg4: memref<16x1xf32, #tpu.memory_space<vmem>>, %arg5: memref<16x128xf32, #tpu.memory_space<vmem>>, %arg6: memref<16x128xf32, #tpu.memory_space<vmem>>, %arg7: memref<16x128xf32, #tpu.memory_space<vmem>>) attributes {dimension_semantics = [#tpu.dimension_semantics<parallel>, #tpu.dimension_semantics<arbitrary>], iteration_bounds = array<i64: 1, 1>, scalar_prefetch = 0 : i64, scratch_operands = 3 : i64, tpu.core_type = #tpu.core_type<tc>, window_params = [{transform_indices = @transform_0, window_bounds = array<i64: 16, 128>}, {transform_indices = @transform_1, window_bounds = array<i64: 16, 1>}, {transform_indices = @transform_2, window_bounds = array<i64: 16, 1>}]} {
    %c0_i32 = arith.constant 0 : i32
    %0 = arith.cmpi eq, %arg1, %c0_i32 : i32
    %1 = arith.extui %0 : i1 to i32
    %c0_i32_0 = arith.constant 0 : i32
    %2 = arith.cmpi ne, %1, %c0_i32_0 : i32
    scf.if %2 {
      %cst_25 = arith.constant -1.000000e+30 : f32
      %35 = vector.broadcast %cst_25 : f32 to vector<16x128xf32>
      %c0_26 = arith.constant 0 : index
      %c0_27 = arith.constant 0 : index
      %36 = vector.load %arg5[%c0_26, %c0_27] : memref<16x128xf32, #tpu.memory_space<vmem>>, vector<16x128xf32>
      tpu.vector_store %arg5[%c0_26, %c0_27], %35 {strides = array<i32>} : memref<16x128xf32, #tpu.memory_space<vmem>>, vector<16x128xf32>,
      %cst_28 = arith.constant 0.000000e+00 : f32
      %37 = vector.broadcast %cst_28 : f32 to vector<16x128xf32>
      %c0_29 = arith.constant 0 : index
      %c0_30 = arith.constant 0 : index
      %38 = vector.load %arg6[%c0_29, %c0_30] : memref<16x128xf32, #tpu.memory_space<vmem>>, vector<16x128xf32>
      tpu.vector_store %arg6[%c0_29, %c0_30], %37 {strides = array<i32>} : memref<16x128xf32, #tpu.memory_space<vmem>>, vector<16x128xf32>,
      %cst_31 = arith.constant 0.000000e+00 : f32
      %39 = vector.broadcast %cst_31 : f32 to vector<16x128xf32>
      %c0_32 = arith.constant 0 : index
      %c0_33 = arith.constant 0 : index
      %40 = vector.load %arg7[%c0_32, %c0_33] : memref<16x128xf32, #tpu.memory_space<vmem>>, vector<16x128xf32>
      tpu.vector_store %arg7[%c0_32, %c0_33], %39 {strides = array<i32>} : memref<16x128xf32, #tpu.memory_space<vmem>>, vector<16x128xf32>,
    } else {
    }
    %c0 = arith.constant 0 : index
    %c0_1 = arith.constant 0 : index
    %3 = vector.load %arg2[%c0, %c0_1] : memref<16x128xf32, #tpu.memory_space<vmem>>, vector<16x128xf32>
    %c0_2 = arith.constant 0 : index
    %c0_3 = arith.constant 0 : index
    %4 = vector.load %arg5[%c0_2, %c0_3] : memref<16x128xf32, #tpu.memory_space<vmem>>, vector<16x128xf32>
    %5 = arith.maximumf %4, %3 : vector<16x128xf32>
    %c0_4 = arith.constant 0 : index
    %c0_5 = arith.constant 0 : index
    %6 = vector.load %arg5[%c0_4, %c0_5] : memref<16x128xf32, #tpu.memory_space<vmem>>, vector<16x128xf32>
    tpu.vector_store %arg5[%c0_4, %c0_5], %5 {strides = array<i32>} : memref<16x128xf32, #tpu.memory_space<vmem>>, vector<16x128xf32>,
    %c0_6 = arith.constant 0 : index
    %c0_7 = arith.constant 0 : index
    %7 = vector.load %arg6[%c0_6, %c0_7] : memref<16x128xf32, #tpu.memory_space<vmem>>, vector<16x128xf32>
    %8 = arith.subf %4, %5 : vector<16x128xf32>
    %9 = math.exp %8 : vector<16x128xf32>
    %10 = arith.mulf %7, %9 : vector<16x128xf32>
    %c0_8 = arith.constant 0 : index
    %c0_9 = arith.constant 0 : index
    %11 = vector.load %arg6[%c0_8, %c0_9] : memref<16x128xf32, #tpu.memory_space<vmem>>, vector<16x128xf32>
    tpu.vector_store %arg6[%c0_8, %c0_9], %10 {strides = array<i32>} : memref<16x128xf32, #tpu.memory_space<vmem>>, vector<16x128xf32>,
    %12 = tpu.iota {dimensions = array<i32: 1>} : vector<16x128xi32>
    %c0_10 = arith.constant 0 : index
    %c0_11 = arith.constant 0 : index
    %13 = vector.load %arg3[%c0_10, %c0_11] : memref<16x1xi32, #tpu.memory_space<vmem>>, vector<16x1xi32>
    %c128_i32 = arith.constant 128 : i32
    %14 = arith.muli %arg1, %c128_i32 : i32
    %15 = vector.broadcast %14 : i32 to vector<16x1xi32>
    %16 = arith.subi %13, %15 : vector<16x1xi32>
    %c0_12 = arith.constant 0 : index
    %c0_13 = arith.constant 0 : index
    %17 = vector.load %arg2[%c0_12, %c0_13] : memref<16x128xf32, #tpu.memory_space<vmem>>, vector<16x128xf32>
    %c0_14 = arith.constant 0 : index
    %c0_15 = arith.constant 0 : index
    %18 = vector.load %arg6[%c0_14, %c0_15] : memref<16x128xf32, #tpu.memory_space<vmem>>, vector<16x128xf32>
    %19 = arith.subf %17, %5 : vector<16x128xf32>
    %20 = math.exp %19 : vector<16x128xf32>
    %21 = arith.addf %18, %20 : vector<16x128xf32>
    %c0_16 = arith.constant 0 : index
    %c0_17 = arith.constant 0 : index
    %22 = vector.load %arg6[%c0_16, %c0_17] : memref<16x128xf32, #tpu.memory_space<vmem>>, vector<16x128xf32>
    tpu.vector_store %arg6[%c0_16, %c0_17], %21 {strides = array<i32>} : memref<16x128xf32, #tpu.memory_space<vmem>>, vector<16x128xf32>,
    %c0_18 = arith.constant 0 : index
    %c0_19 = arith.constant 0 : index
    %23 = vector.load %arg7[%c0_18, %c0_19] : memref<16x128xf32, #tpu.memory_space<vmem>>, vector<16x128xf32>
    %c0_i32_20 = arith.constant 0 : i32
    %24 = vector.broadcast %c0_i32_20 : i32 to vector<16x1xi32>
    %25 = arith.subi %16, %24 : vector<16x1xi32>
    %26 = vector.broadcast %25 : vector<16x1xi32> to vector<16x128xi32>
    %27 = arith.cmpi eq, %12, %26 : vector<16x128xi32>
    %cst = arith.constant 0.000000e+00 : f32
    %28 = vector.broadcast %cst : f32 to vector<16x128xf32>
    %29 = arith.select %27, %17, %28 : vector<16x128xi1>, vector<16x128xf32>
    %30 = arith.addf %23, %29 : vector<16x128xf32>
    %c0_21 = arith.constant 0 : index
    %c0_22 = arith.constant 0 : index
    %31 = vector.load %arg7[%c0_21, %c0_22] : memref<16x128xf32, #tpu.memory_space<vmem>>, vector<16x128xf32>
    tpu.vector_store %arg7[%c0_21, %c0_22], %30 {strides = array<i32>} : memref<16x128xf32, #tpu.memory_space<vmem>>, vector<16x128xf32>,
    %c0_i32_23 = arith.constant 0 : i32
    %32 = arith.cmpi eq, %arg1, %c0_i32_23 : i32
    %33 = arith.extui %32 : i1 to i32
    %c0_i32_24 = arith.constant 0 : i32
    %34 = arith.cmpi ne, %33, %c0_i32_24 : i32
    scf.if %34 {
      %c0_25 = arith.constant 0 : index
      %c0_26 = arith.constant 0 : index
      %35 = vector.load %arg5[%c0_25, %c0_26] : memref<16x128xf32, #tpu.memory_space<vmem>>, vector<16x128xf32>
      %cst_27 = arith.constant dense<0xFF800000> : vector<16xf32>
      %36 = vector.multi_reduction <maximumf>, %35, %cst_27 [1] : vector<16x128xf32> to vector<16xf32>
      %37 = vector.shape_cast %36 : vector<16xf32> to vector<16x1xf32>
      %c0_28 = arith.constant 0 : index
      %c0_29 = arith.constant 0 : index
      %38 = vector.load %arg6[%c0_28, %c0_29] : memref<16x128xf32, #tpu.memory_space<vmem>>, vector<16x128xf32>
      %39 = vector.broadcast %37 : vector<16x1xf32> to vector<16x128xf32>
      %40 = arith.subf %35, %39 : vector<16x128xf32>
      %41 = math.exp %40 : vector<16x128xf32>
      %42 = arith.mulf %38, %41 : vector<16x128xf32>
      %cst_30 = arith.constant dense<0.000000e+00> : vector<16xf32>
      %43 = vector.multi_reduction <add>, %42, %cst_30 [1] : vector<16x128xf32> to vector<16xf32>
      %44 = vector.shape_cast %43 : vector<16xf32> to vector<16x1xf32>
      %c0_31 = arith.constant 0 : index
      %c0_32 = arith.constant 0 : index
      %45 = vector.load %arg7[%c0_31, %c0_32] : memref<16x128xf32, #tpu.memory_space<vmem>>, vector<16x128xf32>
      %cst_33 = arith.constant dense<0.000000e+00> : vector<16xf32>
      %46 = vector.multi_reduction <add>, %45, %cst_33 [1] : vector<16x128xf32> to vector<16xf32>
      %47 = vector.shape_cast %46 : vector<16xf32> to vector<16x1xf32>
      %48 = math.log %44 : vector<16x1xf32>
      %49 = arith.addf %37, %48 : vector<16x1xf32>
      %50 = arith.subf %49, %47 : vector<16x1xf32>
      %c0_34 = arith.constant 0 : index
      %c0_35 = arith.constant 0 : index
      %51 = vector.load %arg4[%c0_34, %c0_35] : memref<16x1xf32, #tpu.memory_space<vmem>>, vector<16x1xf32>
      tpu.vector_store %arg4[%c0_34, %c0_35], %50 {strides = array<i32>} : memref<16x1xf32, #tpu.memory_space<vmem>>, vector<16x1xf32>,
    } else {
    }
    return
  }
  func.func @transform_0(%arg0: i32, %arg1: i32) -> (i32, i32) {
    %c0_i32 = arith.constant 0 : i32
    return %arg0, %arg1 : i32, i32
  }
  func.func @transform_1(%arg0: i32, %arg1: i32) -> (i32, i32) {
    %c0_i32 = arith.constant 0 : i32
    %c0_i32_0 = arith.constant 0 : i32
    return %arg0, %c0_i32 : i32, i32
  }
  func.func @transform_2(%arg0: i32, %arg1: i32) -> (i32, i32) {
    %c0_i32 = arith.constant 0 : i32
    %c0_i32_0 = arith.constant 0 : i32
    return %arg0, %c0_i32 : i32, i32
  }
}

</mosaic_0001>

<llo_original>
// kernel: tpu_custom_call.1
$region0: #{tpu_custom_call.1}
  #allocation0 [shape = 'u32[]', space=smem, size = 0x4, offset = 0x4, fixed_abs, tag = 'smem constant byte address 0x4 - core index']
  #allocation1 [shape = 'u32[144,128]{1,0:T(1,128)}', space=vmem, size = 0x12000, scoped, tag = 'internal scratch']
  #allocation2 [shape = 'f32[16,128]{1,0:T(8,128)}', space=vmem, size = 0x2000, scoped, tag = 'scratch operand']
  #allocation3 [shape = 'f32[16,128]{1,0:T(8,128)}', space=vmem, size = 0x2000, scoped, tag = 'scratch operand']
  #allocation4 [shape = 'f32[16,128]{1,0:T(8,128)}', space=vmem, size = 0x2000, scoped, tag = 'scratch operand']
  %s0 = inlined_call_operand.vmem [shape: f32[16,128], index: 0, kind: input, shape index: {}]
  %s1 = inlined_call_operand.vmem [shape: s32[16,1], index: 1, kind: input, shape index: {}]
  %s2 = inlined_call_operand.vmem [shape: f32[16,1], index: 2, kind: output, shape index: {}]
  %s3 = sld [smem:[#allocation0]]
  $region26: #{tpu_custom_call.1} parent=0
    _
  %s5 = ssub.s32 1, %s3
  %s6 = scalar_select 0, %s5, %s3
  // Predicated region
  $region2: #{tpu_custom_call.1} parent=0 // pred_check
    _
  $region3: #{tpu_custom_call.1} parent=0 // pred_check_branch
    %8 = sbr.rel (0) target = $region5
  $region4: #{tpu_custom_call.1} parent=0 // pred_region
    _
  $region5: #{tpu_custom_call.1} parent=0 // pred_fallthru
    _
  // Predicated region
  $region6: #{tpu_custom_call.1} parent=0 // pred_check
    _
  $region7: #{tpu_custom_call.1} parent=0 // pred_check_branch
    %10 = sbr.rel (0) target = $region9
  $region8: #{tpu_custom_call.1} parent=0 // pred_region
    _
  $region9: #{tpu_custom_call.1} parent=0 // pred_fallthru
    _
  %p11 = scmp.eq.s32.totalorder 0, 0
  // Predicated region
  $region10: #{tpu_custom_call.1} parent=0 // pred_check
    %p12 = pneg %p11
  $region11: #{tpu_custom_call.1} parent=0 // pred_check_branch
    %14 = sbr.rel (%p12) target = $region13
  $region12: #{tpu_custom_call.1} parent=0 // pred_region
    %15 = vst [vmem:[#allocation2] sm:$0xff] -1e+30
    %16 = vst [vmem:[#allocation2 + $0x8] sm:$0xff] -1e+30
    %17 = vst [vmem:[#allocation3] sm:$0xff] 0.0
    %18 = vst [vmem:[#allocation3 + $0x8] sm:$0xff] 0.0
    %19 = vst [vmem:[#allocation4] sm:$0xff] 0.0
    %20 = vst [vmem:[#allocation4 + $0x8] sm:$0xff] 0.0
  $region13: #{tpu_custom_call.1} parent=0 // pred_fallthru
    _
  %v21 = vld [vmem:[%s0] sm:$0xff]
  %v22 = vld [vmem:[%s0 + $0x8] sm:$0xff]
  %v23 = vld [vmem:[#allocation2] sm:$0xff]
  %v24 = vld [vmem:[#allocation2 + $0x8] sm:$0xff]
  %v25 = vmax.f32 %v23, %v21
  %v26 = vmax.f32 %v24, %v22
  %27 = vst [vmem:[#allocation2] sm:$0xff] %v25
  %28 = vst [vmem:[#allocation2 + $0x8] sm:$0xff] %v26
  %v29 = vld [vmem:[#allocation3] sm:$0xff]
  %v30 = vld [vmem:[#allocation3 + $0x8] sm:$0xff]
  %v31 = vsub.f32 %v23, %v25
  %v32 = vsub.f32 %v24, %v26
  %v33 = vmul.f32 %v31, 1.442695
  %v34 = vpow.pop %v33
  %v35 = vmul.f32 %v32, 1.442695
  %v36 = vpow.pop %v35
  %v37 = vmul.f32 %v29, %v34
  %v38 = vmul.f32 %v30, %v36
  %39 = vst [vmem:[#allocation3] sm:$0xff] %v37
  %40 = vst [vmem:[#allocation3 + $0x8] sm:$0xff] %v38
  %v41 = vlaneseq
  %v42 = vand.u32 %v41, 127
  %v43 = vld [vmem:[%s1] sm:$0xff]
  %v44 = vld [vmem:[%s1 + $0x8] sm:$0xff]
  %s45 = smul.u32 0, 128
  %v46 = vstv %s45
  %v47 = vsub.s32 %v43, %v46
  %v48 = vsub.s32 %v44, %v46
  %v49 = vld [vmem:[%s0] sm:$0xff]
  %v50 = vld [vmem:[%s0 + $0x8] sm:$0xff]
  %v51 = vld [vmem:[#allocation3] sm:$0xff]
  %v52 = vld [vmem:[#allocation3 + $0x8] sm:$0xff]
  %v53 = vsub.f32 %v49, %v25
  %v54 = vsub.f32 %v50, %v26
  %v55 = vmul.f32 %v53, 1.442695
  %v56 = vpow.pop %v55
  %v57 = vmul.f32 %v54, 1.442695
  %v58 = vpow.pop %v57
  %v59 = vadd.f32 %v51, %v56
  %v60 = vadd.f32 %v52, %v58
  %61 = vst [vmem:[#allocation3] sm:$0xff] %v59
  %62 = vst [vmem:[#allocation3 + $0x8] sm:$0xff] %v60
  %v63 = vld [vmem:[#allocation4] sm:$0xff]
  %v64 = vld [vmem:[#allocation4 + $0x8] sm:$0xff]
  %65 = vset.pattern.permute.xlu0 0
  %66 = vperm.xlu0 %65, %v47
  %v67 = vpop.permute.xlu0 %66
  %68 = vset.pattern.permute.xlu0 0
  %69 = vperm.xlu0 %68, %v48
  %v70 = vpop.permute.xlu0 %69
  %vm71 = vcmp.eq.s32.totalorder %v42, %v67
  %vm72 = vcmp.eq.s32.totalorder %v42, %v70
  %v73 = vsel %vm71, %v49, 0.0
  %v74 = vsel %vm72, %v50, 0.0
  %v75 = vadd.f32 %v63, %v73
  %v76 = vadd.f32 %v64, %v74
  %77 = vst [vmem:[#allocation4] sm:$0xff] %v75
  %78 = vst [vmem:[#allocation4 + $0x8] sm:$0xff] %v76
  // Predicated region
  $region14: #{tpu_custom_call.1} parent=0 // pred_check
    %p79 = pneg %p11
  $region15: #{tpu_custom_call.1} parent=0 // pred_check_branch
    %81 = sbr.rel (%p79) target = $region17
  $region16: #{tpu_custom_call.1} parent=0 // pred_region
    %v82 = vld [vmem:[#allocation2] sm:$0xff]
    %v83 = vld [vmem:[#allocation2 + $0x8] sm:$0xff]
    %84 = vmax.xlane.f32.xlu0 %v82
    %v85 = vpop.xlane.xlu0 %84
    %86 = vmax.xlane.f32.xlu0 %v83
    %v87 = vpop.xlane.xlu0 %86
    %v88 = vld [vmem:[#allocation3] sm:$0xff]
    %v89 = vld [vmem:[#allocation3 + $0x8] sm:$0xff]
    %v90 = vsub.f32 %v82, %v85
    %v91 = vsub.f32 %v83, %v87
    %v92 = vmul.f32 %v90, 1.442695
    %v93 = vpow.pop %v92
    %v94 = vmul.f32 %v91, 1.442695
    %v95 = vpow.pop %v94
    %v96 = vmul.f32 %v88, %v93
    %v97 = vmul.f32 %v89, %v95
    %98 = vadd.xlane.f32.xlu0 %v96
    %v99 = vpop.xlane.xlu0 %98
    %100 = vadd.xlane.f32.xlu0 %v97
    %v101 = vpop.xlane.xlu0 %100
    %v102 = vld [vmem:[#allocation4] sm:$0xff]
    %v103 = vld [vmem:[#allocation4 + $0x8] sm:$0xff]
    %104 = vadd.xlane.f32.xlu0 %v102
    %v105 = vpop.xlane.xlu0 %104
    %106 = vadd.xlane.f32.xlu0 %v103
    %v107 = vpop.xlane.xlu0 %106
    %v108 = vlog2.pop %v99
    %v109 = vmul.f32 %v108, 0.6931472
    %v110 = vlog2.pop %v101
    %v111 = vmul.f32 %v110, 0.6931472
    %v112 = vadd.f32 %v85, %v109
    %v113 = vadd.f32 %v87, %v111
    %v114 = vsub.f32 %v112, %v105
    %v115 = vsub.f32 %v113, %v107
    %vm116 = vcmask 7168
    %117 = vst.msk [vmem:[%s2] sm:$0xff] %vm116, %v114
    %118 = vst.msk [vmem:[%s2 + $0x8] sm:$0xff] %vm116, %v115
  $region17: #{tpu_custom_call.1} parent=0 // pred_fallthru
    _
  // Predicated region
  $region18: #{tpu_custom_call.1} parent=0 // pred_check
    _
  $region19: #{tpu_custom_call.1} parent=0 // pred_check_branch
    %120 = sbr.rel (0) target = $region21
  $region20: #{tpu_custom_call.1} parent=0 // pred_region
    _
  $region21: #{tpu_custom_call.1} parent=0 // pred_fallthru
    _
  // Predicated region
  $region22: #{tpu_custom_call.1} parent=0 // pred_check
    _
  $region23: #{tpu_custom_call.1} parent=0 // pred_check_branch
    %122 = sbr.rel (0) target = $region25
  $region24: #{tpu_custom_call.1} parent=0 // pred_region
    _
  $region25: #{tpu_custom_call.1} parent=0 // pred_fallthru
    _

</llo_original>
